<compile_context>
chip_gen: v7x
topology: tpu7x:2x2x1
jax: 0.10.0
libtpu: 0.0.40
codegen_flags: <defaults>
</compile_context>

<pallas_src>
import jax
import jax.numpy as jnp
from jax import lax
from jax.experimental import pallas as pl
from jax.experimental.pallas import tpu as pltpu


def _make_pinn_loss_kernel(blk_n, tiles_per_core, total_tiles, n_rows,
                           mse_scale, pinn_scale, needs_mask, compute_dtype):
    """Kernel closed over static sizes and hoisted scalars."""

    def kernel(x_ref, inp_ref, tgt_ref, at_ref, bt_ref, bvec_ref, out_ref):
        t = pl.program_id(1)

        # Resident accumulator block: init once per core (t == 0).
        @pl.when(t == 0)
        def _():
            out_ref[...] = jnp.zeros_like(out_ref)

        mse_s = jnp.float32(mse_scale)
        pinn_s = jnp.float32(pinn_scale)

        # Streamed tiles in native dtype for the MXU (no f32 upcast).
        x = x_ref[...]
        inp = inp_ref[...]
        if x.dtype != compute_dtype:
            x = x.astype(compute_dtype)
        if inp.dtype != compute_dtype:
            inp = inp.astype(compute_dtype)

        # PINN residual, lane-dense: R[blk_n, m], f32 accumulation on the MXU.
        r = (
            jnp.dot(inp, bt_ref[...], preferred_element_type=jnp.float32)
            + jnp.dot(x, at_ref[...], preferred_element_type=jnp.float32)
            - bvec_ref[...]
        )
        r2 = r * r

        # MSE term in f32.
        diff = inp_ref[...].astype(jnp.float32) - tgt_ref[...].astype(jnp.float32)
        d2 = diff * diff

        def accumulate(d2v, r2v):
            out_ref[...] += jnp.sum(d2v) * mse_s + jnp.sum(r2v) * pinn_s

        if needs_mask:
            flat = pl.program_id(0) * tiles_per_core + t
            is_last = flat == (total_tiles - 1)
            # Number of valid rows in the final tile (static python int).
            valid_rows = n_rows - (total_tiles - 1) * blk_n

            @pl.when(is_last)
            def _():
                rows = lax.broadcasted_iota(jnp.int32, (blk_n, 1), 0)
                ok = rows < valid_rows          # (blk_n, 1), reused for both terms
                accumulate(jnp.where(ok, d2, 0.0), jnp.where(ok, r2, 0.0))

            @pl.when(jnp.logical_not(is_last))
            def _():
                accumulate(d2, r2)
        else:
            accumulate(d2, r2)

    return kernel


def _vmem_limit_bytes():
    """Generation-aware VMEM budget: ~3/4 of per-core capacity, capped."""
    try:
        cap = int(pltpu.get_tpu_info().vmem_capacity_bytes)
        return min((cap * 3) // 4, 100 * 1024 * 1024)   # 48 MiB v7x, 96 MiB v5e/v6e
    except Exception:
        return 48 * 1024 * 1024                          # safe on every generation


def pinn_loss(X, inp, tgt, A, B, b, eta, reduction="mean", tile_n=None):
    """Pallas implementation of PINNLoss.forward.

    X:   [N, d_x]   collocation / state inputs
    inp: [N, d_u]   network prediction ("input" in the PyTorch code)
    tgt: [N, d_u]   target
    A:   [m, d_x],  B: [m, d_u],  b: [m],  eta: python float
    """
    # TODO(synk): reductions other than 'mean' (sum / none) are not implemented.
    assert reduction == "mean"

    N, d_x = X.shape
    _, d_u = inp.shape
    m = A.shape[0]

    compute_dtype = jnp.promote_types(X.dtype, inp.dtype)
    if not jnp.issubdtype(compute_dtype, jnp.floating):
        compute_dtype = jnp.float32

    stream_itemsize = min(jnp.dtype(X.dtype).itemsize,
                          jnp.dtype(inp.dtype).itemsize,
                          jnp.dtype(tgt.dtype).itemsize)
    # Packed-sublane multiple for the streamed dtype: f32->8, bf16->16, int8->32.
    pack = 32 // stream_itemsize

    vmem_limit = _vmem_limit_bytes()

    if tile_n is None:
        # Size tile_n from the lane-padded VMEM footprint: streamed tiles are
        # double-buffered, plus f32 intermediates; target ~half the limit.
        lane_pad = lambda d: -(-d // 128) * 128
        stream_row = (lane_pad(d_x) + 2 * lane_pad(d_u)) * stream_itemsize
        temp_row = (2 * lane_pad(d_u) + 2 * lane_pad(m)) * 4
        budget = vmem_limit // 2
        tile_n = budget // (2 * stream_row + temp_row)
        tile_n = min(tile_n, 32768)

    if tile_n >= N:
        tile_n = N                       # single full-extent tile (no divisibility rule)
    else:
        tile_n = max(pack, (tile_n // pack) * pack)

    total_tiles = pl.cdiv(N, tile_n)
    needs_mask = (N % tile_n) != 0
    # Split tiles across the two v7x TensorCores when the count divides evenly.
    num_cores = 2 if (total_tiles >= 2 and total_tiles % 2 == 0) else 1
    tiles_per_core = total_tiles // num_cores

    # Tiny resident weights: cast once to the stream compute dtype so the MXU
    # runs native precision (bf16 stays bf16).  Bias row stays f32.
    A_T = jnp.asarray(A, compute_dtype).T                # [d_x, m]
    B_T = jnp.asarray(B, compute_dtype).T                # [d_u, m]
    b_row = jnp.asarray(b, jnp.float32).reshape(1, m)    # [1, m]

    mse_scale = 1.0 / float(N * d_u)
    pinn_scale = float(eta) / float(N * m)

    bytes_accessed = int(
        X.size * X.dtype.itemsize
        + inp.size * inp.dtype.itemsize
        + tgt.size * tgt.dtype.itemsize
        + (A_T.size + B_T.size) * jnp.dtype(compute_dtype).itemsize
        + b_row.size * 4
        + num_cores * 4
    )
    flops = int(2 * N * (d_x + d_u) * m + 4 * N * d_u + 4 * N * m)

    kernel = _make_pinn_loss_kernel(
        tile_n, tiles_per_core, total_tiles, N,
        mse_scale, pinn_scale, needs_mask, compute_dtype,
    )

    partials = pl.pallas_call(
        kernel,
        out_shape=jax.ShapeDtypeStruct((num_cores, 1), jnp.float32),
        grid=(num_cores, tiles_per_core),
        in_specs=[
            pl.BlockSpec((tile_n, d_x), lambda c, t: (c * tiles_per_core + t, 0)),
            pl.BlockSpec((tile_n, d_u), lambda c, t: (c * tiles_per_core + t, 0)),
            pl.BlockSpec((tile_n, d_u), lambda c, t: (c * tiles_per_core + t, 0)),
            pl.BlockSpec((d_x, m), lambda c, t: (0, 0)),   # A.T (resident)
            pl.BlockSpec((d_u, m), lambda c, t: (0, 0)),   # B.T (resident)
            pl.BlockSpec((1, m), lambda c, t: (0, 0)),     # b row (resident)
        ],
        out_specs=pl.BlockSpec((1, 1), lambda c, t: (c, 0)),  # per-core partial
        compiler_params=pltpu.CompilerParams(
            dimension_semantics=("parallel", "arbitrary"),
            vmem_limit_bytes=int(vmem_limit),
        ),
        cost_estimate=pl.CostEstimate(
            flops=flops, transcendentals=0, bytes_accessed=bytes_accessed
        ),
    )(X, inp, tgt, A_T, B_T, b_row)

    # <= 2 per-core partials -> final scalar.
    return jnp.sum(partials)


if __name__ == "__main__":
    # Small, deterministic shapes consistent with the module:
    #   N batch rows, d_x state dim, d_u output dim, m constraint rows.
    N, d_x, d_u, m = 200, 32, 16, 8
    eta = 0.5

    key = jax.random.PRNGKey(0)
    k1, k2, k3, k4, k5, k6 = jax.random.split(key, 6)
    X = jax.random.normal(k1, (N, d_x), jnp.float32)
    inp = jax.random.normal(k2, (N, d_u), jnp.float32)
    tgt = jax.random.normal(k3, (N, d_u), jnp.float32)
    A = jax.random.normal(k4, (m, d_x), jnp.float32) * 0.1
    B = jax.random.normal(k5, (m, d_u), jnp.float32) * 0.1
    b = jax.random.normal(k6, (m,), jnp.float32)

    # Pure-JAX reference mirroring the PyTorch math exactly.
    def reference(Xr, ir, tr, Ar, Br, br):
        mse = jnp.mean((ir - tr) ** 2)
        resid = Br @ ir.T + Ar @ Xr.T - br[:, None]
        return mse + jnp.mean(eta * resid ** 2)

    ref = reference(X, inp, tgt, A, B, b)

    # 1) Auto-sized tile (whole batch in one full-extent tile at this small N).
    loss_auto = jax.block_until_ready(pinn_loss(X, inp, tgt, A, B, b, eta))
    assert jnp.allclose(loss_auto, ref, rtol=1e-5, atol=1e-5), (loss_auto, ref)

    # 2) Forced multi-tile: 4 tiles -> (2, 2) grid (megacore split) with a
    #    masked partial last tile and the resident accumulator output.
    loss_2d = jax.block_until_ready(pinn_loss(X, inp, tgt, A, B, b, eta, tile_n=64))
    assert jnp.allclose(loss_2d, ref, rtol=1e-5, atol=1e-5), (loss_2d, ref)

    # 3) Odd tile count: 5 tiles -> (1, 5) grid path.
    loss_1d = jax.block_until_ready(pinn_loss(X, inp, tgt, A, B, b, eta, tile_n=48))
    assert jnp.allclose(loss_1d, ref, rtol=1e-5, atol=1e-5), (loss_1d, ref)

    # 4) bf16 streams: exercises the native-dtype MXU path and the bf16
    #    sublane-pack tile rounding.  Reference uses the same bf16-rounded
    #    inputs/weights so only accumulation-order noise remains.
    Xb = X.astype(jnp.bfloat16)
    inpb = inp.astype(jnp.bfloat16)
    tgtb = tgt.astype(jnp.bfloat16)
    Ab = A.astype(jnp.bfloat16).astype(jnp.float32)
    Bb = B.astype(jnp.bfloat16).astype(jnp.float32)
    ref_bf16 = reference(Xb.astype(jnp.float32), inpb.astype(jnp.float32),
                         tgtb.astype(jnp.float32), Ab, Bb, b)
    loss_bf16 = jax.block_until_ready(
        pinn_loss(Xb, inpb, tgtb, A, B, b, eta, tile_n=64))
    assert jnp.allclose(loss_bf16, ref_bf16, rtol=5e-3, atol=5e-3), (loss_bf16, ref_bf16)

    print("KERNEL_OK")
</pallas_src>

<mosaic_0001>
module attributes {stable_mosaic.version = 11 : i64} {
  func.func @kernel(%arg0: i32, %arg1: i32, %arg2: memref<200x32xf32, #tpu.memory_space<vmem>>, %arg3: memref<200x16xf32, #tpu.memory_space<vmem>>, %arg4: memref<200x16xf32, #tpu.memory_space<vmem>>, %arg5: memref<32x8xf32, #tpu.memory_space<vmem>>, %arg6: memref<16x8xf32, #tpu.memory_space<vmem>>, %arg7: memref<1x8xf32, #tpu.memory_space<vmem>>, %arg8: memref<1x1xf32, #tpu.memory_space<vmem>>) attributes {dimension_semantics = [#tpu.dimension_semantics<parallel>, #tpu.dimension_semantics<arbitrary>], iteration_bounds = array<i64: 1, 1>, scalar_prefetch = 0 : i64, scratch_operands = 0 : i64, tpu.core_type = #tpu.core_type<tc>, window_params = [{transform_indices = @transform_0, window_bounds = array<i64: 200, 32>}, {transform_indices = @transform_1, window_bounds = array<i64: 200, 16>}, {transform_indices = @transform_2, window_bounds = array<i64: 200, 16>}, {pipeline_mode = #tpu.pipeline_mode<synchronous>, transform_indices = @transform_3, window_bounds = array<i64: 32, 8>}, {pipeline_mode = #tpu.pipeline_mode<synchronous>, transform_indices = @transform_4, window_bounds = array<i64: 16, 8>}, {pipeline_mode = #tpu.pipeline_mode<synchronous>, transform_indices = @transform_5, window_bounds = array<i64: 1, 8>}, {transform_indices = @transform_6, window_bounds = array<i64: 1, 1>}]} {
    %c0_i32 = arith.constant 0 : i32
    %0 = arith.cmpi eq, %arg1, %c0_i32 : i32
    %1 = arith.extui %0 : i1 to i32
    %c0_i32_0 = arith.constant 0 : i32
    %2 = arith.cmpi ne, %1, %c0_i32_0 : i32
    scf.if %2 {
      %cst_23 = arith.constant 0.000000e+00 : f32
      %33 = vector.broadcast %cst_23 : f32 to vector<1x1xf32>
      %c0_24 = arith.constant 0 : index
      %c0_25 = arith.constant 0 : index
      %34 = vector.load %arg8[%c0_24, %c0_25] : memref<1x1xf32, #tpu.memory_space<vmem>>, vector<1x1xf32>
      tpu.vector_store %arg8[%c0_24, %c0_25], %33 {strides = array<i32>} : memref<1x1xf32, #tpu.memory_space<vmem>>, vector<1x1xf32>,
    } else {
    }
    %c0 = arith.constant 0 : index
    %c0_1 = arith.constant 0 : index
    %3 = vector.load %arg2[%c0, %c0_1] : memref<200x32xf32, #tpu.memory_space<vmem>>, vector<200x32xf32>
    %c0_2 = arith.constant 0 : index
    %c0_3 = arith.constant 0 : index
    %4 = vector.load %arg3[%c0_2, %c0_3] : memref<200x16xf32, #tpu.memory_space<vmem>>, vector<200x16xf32>
    %c0_4 = arith.constant 0 : index
    %c0_5 = arith.constant 0 : index
    %5 = vector.load %arg6[%c0_4, %c0_5] : memref<16x8xf32, #tpu.memory_space<vmem>>, vector<16x8xf32>
    %cst = arith.constant dense<0.000000e+00> : vector<200x8xf32>
    %6 = tpu.matmul %4, %5, %cst {dimension_numbers = #tpu.dot_dimension_numbers<[1], [0], [0], [1], [0, 0, 1, 1], [], []>} : vector<200x16xf32>, vector<16x8xf32>, vector<200x8xf32> -> vector<200x8xf32>
    %c0_6 = arith.constant 0 : index
    %c0_7 = arith.constant 0 : index
    %7 = vector.load %arg5[%c0_6, %c0_7] : memref<32x8xf32, #tpu.memory_space<vmem>>, vector<32x8xf32>
    %cst_8 = arith.constant dense<0.000000e+00> : vector<200x8xf32>
    %8 = tpu.matmul %3, %7, %cst_8 {dimension_numbers = #tpu.dot_dimension_numbers<[1], [0], [0], [1], [0, 0, 1, 1], [], []>} : vector<200x32xf32>, vector<32x8xf32>, vector<200x8xf32> -> vector<200x8xf32>
    %9 = arith.addf %6, %8 : vector<200x8xf32>
    %c0_9 = arith.constant 0 : index
    %c0_10 = arith.constant 0 : index
    %10 = vector.load %arg7[%c0_9, %c0_10] : memref<1x8xf32, #tpu.memory_space<vmem>>, vector<1x8xf32>
    %11 = vector.broadcast %10 : vector<1x8xf32> to vector<200x8xf32>
    %12 = arith.subf %9, %11 : vector<200x8xf32>
    %13 = arith.mulf %12, %12 : vector<200x8xf32>
    %c0_11 = arith.constant 0 : index
    %c0_12 = arith.constant 0 : index
    %14 = vector.load %arg3[%c0_11, %c0_12] : memref<200x16xf32, #tpu.memory_space<vmem>>, vector<200x16xf32>
    %c0_13 = arith.constant 0 : index
    %c0_14 = arith.constant 0 : index
    %15 = vector.load %arg4[%c0_13, %c0_14] : memref<200x16xf32, #tpu.memory_space<vmem>>, vector<200x16xf32>
    %16 = arith.subf %14, %15 : vector<200x16xf32>
    %17 = arith.mulf %16, %16 : vector<200x16xf32>
    %c0_15 = arith.constant 0 : index
    %c0_16 = arith.constant 0 : index
    %18 = vector.load %arg8[%c0_15, %c0_16] : memref<1x1xf32, #tpu.memory_space<vmem>>, vector<1x1xf32>
    %19 = vector.shape_cast %17 : vector<200x16xf32> to vector<1x200x16xf32>
    %cst_17 = arith.constant dense<0.000000e+00> : vector<1xf32>
    %20 = vector.multi_reduction <add>, %19, %cst_17 [1, 2] : vector<1x200x16xf32> to vector<1xf32>
    %21 = vector.shape_cast %20 : vector<1xf32> to vector<1x1x1xf32>
    %22 = vector.extract %21[0, 0, 0] : f32 from vector<1x1x1xf32>
    %cst_18 = arith.constant 3.125000e-04 : f32
    %23 = arith.mulf %22, %cst_18 : f32
    %24 = vector.shape_cast %13 : vector<200x8xf32> to vector<1x200x8xf32>
    %cst_19 = arith.constant dense<0.000000e+00> : vector<1xf32>
    %25 = vector.multi_reduction <add>, %24, %cst_19 [1, 2] : vector<1x200x8xf32> to vector<1xf32>
    %26 = vector.shape_cast %25 : vector<1xf32> to vector<1x1x1xf32>
    %27 = vector.extract %26[0, 0, 0] : f32 from vector<1x1x1xf32>
    %cst_20 = arith.constant 3.125000e-04 : f32
    %28 = arith.mulf %27, %cst_20 : f32
    %29 = arith.addf %23, %28 : f32
    %30 = vector.broadcast %29 : f32 to vector<1x1xf32>
    %31 = arith.addf %18, %30 : vector<1x1xf32>
    %c0_21 = arith.constant 0 : index
    %c0_22 = arith.constant 0 : index
    %32 = vector.load %arg8[%c0_21, %c0_22] : memref<1x1xf32, #tpu.memory_space<vmem>>, vector<1x1xf32>
    tpu.vector_store %arg8[%c0_21, %c0_22], %31 {strides = array<i32>} : memref<1x1xf32, #tpu.memory_space<vmem>>, vector<1x1xf32>,
    return
  }
  func.func @transform_0(%arg0: i32, %arg1: i32) -> (i32, i32) {
    %c1_i32 = arith.constant 1 : i32
    %0 = arith.muli %arg0, %c1_i32 : i32
    %1 = arith.addi %0, %arg1 : i32
    %c0_i32 = arith.constant 0 : i32
    %c0_i32_0 = arith.constant 0 : i32
    return %1, %c0_i32 : i32, i32
  }
  func.func @transform_1(%arg0: i32, %arg1: i32) -> (i32, i32) {
    %c1_i32 = arith.constant 1 : i32
    %0 = arith.muli %arg0, %c1_i32 : i32
    %1 = arith.addi %0, %arg1 : i32
    %c0_i32 = arith.constant 0 : i32
    %c0_i32_0 = arith.constant 0 : i32
    return %1, %c0_i32 : i32, i32
  }
  func.func @transform_2(%arg0: i32, %arg1: i32) -> (i32, i32) {
    %c1_i32 = arith.constant 1 : i32
    %0 = arith.muli %arg0, %c1_i32 : i32
    %1 = arith.addi %0, %arg1 : i32
    %c0_i32 = arith.constant 0 : i32
    %c0_i32_0 = arith.constant 0 : i32
    return %1, %c0_i32 : i32, i32
  }
  func.func @transform_3(%arg0: i32, %arg1: i32) -> (i32, i32) {
    %c0_i32 = arith.constant 0 : i32
    %c0_i32_0 = arith.constant 0 : i32
    %c0_i32_1 = arith.constant 0 : i32
    return %c0_i32, %c0_i32_0 : i32, i32
  }
  func.func @transform_4(%arg0: i32, %arg1: i32) -> (i32, i32) {
    %c0_i32 = arith.constant 0 : i32
    %c0_i32_0 = arith.constant 0 : i32
    %c0_i32_1 = arith.constant 0 : i32
    return %c0_i32, %c0_i32_0 : i32, i32
  }
  func.func @transform_5(%arg0: i32, %arg1: i32) -> (i32, i32) {
    %c0_i32 = arith.constant 0 : i32
    %c0_i32_0 = arith.constant 0 : i32
    %c0_i32_1 = arith.constant 0 : i32
    return %c0_i32, %c0_i32_0 : i32, i32
  }
  func.func @transform_6(%arg0: i32, %arg1: i32) -> (i32, i32) {
    %c0_i32 = arith.constant 0 : i32
    %c0_i32_0 = arith.constant 0 : i32
    return %arg0, %c0_i32 : i32, i32
  }
}

</mosaic_0001>

<llo_original>
// kernel: tpu_custom_call.1
$region0: #{tpu_custom_call.1}
  #allocation0 [shape = 'u32[]', space=smem, size = 0x4, offset = 0x4, fixed_abs, tag = 'smem constant byte address 0x4 - core index']
  #allocation1 [shape = 'u32[144,128]{1,0:T(1,128)}', space=vmem, size = 0x12000, scoped, tag = 'internal scratch']
  %s0 = inlined_call_operand.vmem [shape: f32[200,32], index: 0, kind: input, shape index: {}]
  %s1 = inlined_call_operand.vmem [shape: f32[200,16], index: 1, kind: input, shape index: {}]
  %s2 = inlined_call_operand.vmem [shape: f32[200,16], index: 2, kind: input, shape index: {}]
  %s3 = inlined_call_operand.vmem [shape: f32[32,8], index: 3, kind: input, shape index: {}]
  %s4 = inlined_call_operand.vmem [shape: f32[16,8], index: 4, kind: input, shape index: {}]
  %s5 = inlined_call_operand.vmem [shape: f32[1,8], index: 5, kind: input, shape index: {}]
  %s6 = inlined_call_operand.hbm [shape: f32[1,1], index: 6, kind: output, shape index: {}]
  %s7 = sld [smem:[#allocation0]]
  $region38: #{tpu_custom_call.1} parent=0
    _
  %s9 = ssub.s32 1, %s7
  %s10 = scalar_select 0, %s9, %s7
  $region1: #{tpu_custom_call.1} parent=0
    #allocation2 [shape = 'u8[512]{0}', space=vmem, size = 0x400, scoped, tag = 'output window, operand 0, single buffered']
    #allocation3 [shape = 's32[1]{0}', space=sflag, size = 0x4, scoped, tag = 'scoped memory for tpu_custom_call.1']
    %11 = vsyncpa [#allocation3], 0
    // Predicated region
    $region2: #{tpu_custom_call.1} parent=1 // pred_check
      _
    $region3: #{tpu_custom_call.1} parent=1 // pred_check_branch
      %13 = sbr.rel (0) target = $region5
    $region4: #{tpu_custom_call.1} parent=1 // pred_region
      %s14 = sadd.s32 0, 0
      %s15 = smul.u32 25, %s14
      %p16 = scmp.lt.s32.totalorder %s15, 24
      %s17 = scalar_select %p16, %s15, 24
      %s18 = smul.addr %s17, 8
      %s19 = scalar_lea.vmem %s0, %s18
      %s20 = sadd.s32 0, 0
      %s21 = smul.u32 25, %s20
    $region5: #{tpu_custom_call.1} parent=1 // pred_fallthru
      _
    // Predicated region
    $region6: #{tpu_custom_call.1} parent=1 // pred_check
      _
    $region7: #{tpu_custom_call.1} parent=1 // pred_check_branch
      %23 = sbr.rel (0) target = $region9
    $region8: #{tpu_custom_call.1} parent=1 // pred_region
      %s24 = sadd.s32 0, 0
      %s25 = smul.u32 25, %s24
      %p26 = scmp.lt.s32.totalorder %s25, 24
      %s27 = scalar_select %p26, %s25, 24
      %s28 = smul.addr %s27, 8
      %s29 = scalar_lea.vmem %s1, %s28
      %s30 = sadd.s32 0, 0
      %s31 = smul.u32 25, %s30
    $region9: #{tpu_custom_call.1} parent=1 // pred_fallthru
      _
    // Predicated region
    $region10: #{tpu_custom_call.1} parent=1 // pred_check
      _
    $region11: #{tpu_custom_call.1} parent=1 // pred_check_branch
      %33 = sbr.rel (0) target = $region13
    $region12: #{tpu_custom_call.1} parent=1 // pred_region
      %s34 = sadd.s32 0, 0
      %s35 = smul.u32 25, %s34
      %p36 = scmp.lt.s32.totalorder %s35, 24
      %s37 = scalar_select %p36, %s35, 24
      %s38 = smul.addr %s37, 8
      %s39 = scalar_lea.vmem %s2, %s38
      %s40 = sadd.s32 0, 0
      %s41 = smul.u32 25, %s40
    $region13: #{tpu_custom_call.1} parent=1 // pred_fallthru
      _
    // Predicated region
    $region14: #{tpu_custom_call.1} parent=1 // pred_check
      _
    $region15: #{tpu_custom_call.1} parent=1 // pred_check_branch
      %43 = sbr.rel (0) target = $region17
    $region16: #{tpu_custom_call.1} parent=1 // pred_region
      _
    $region17: #{tpu_custom_call.1} parent=1 // pred_fallthru
      _
    // Predicated region
    $region18: #{tpu_custom_call.1} parent=1 // pred_check
      _
    $region19: #{tpu_custom_call.1} parent=1 // pred_check_branch
      %45 = sbr.rel (0) target = $region21
    $region20: #{tpu_custom_call.1} parent=1 // pred_region
      _
    $region21: #{tpu_custom_call.1} parent=1 // pred_fallthru
      _
    // Predicated region
    $region22: #{tpu_custom_call.1} parent=1 // pred_check
      _
    $region23: #{tpu_custom_call.1} parent=1 // pred_check_branch
      %47 = sbr.rel (0) target = $region25
    $region24: #{tpu_custom_call.1} parent=1 // pred_region
      _
    $region25: #{tpu_custom_call.1} parent=1 // pred_fallthru
      _
    %s48 = sadd.s32 0, 0
    %s49 = smul.u32 25, %s48
    %p50 = scmp.lt.s32.totalorder %s49, 24
    %s51 = scalar_select %p50, %s49, 24
    %s52 = smul.addr %s51, 8
    %s53 = scalar_lea.vmem %s0, %s52
    %s54 = sadd.s32 0, 0
    %s55 = smul.u32 25, %s54
    %p56 = scmp.lt.s32.totalorder %s55, 24
    %s57 = scalar_select %p56, %s55, 24
    %s58 = smul.addr %s57, 8
    %s59 = scalar_lea.vmem %s1, %s58
    %s60 = sadd.s32 0, 0
    %s61 = smul.u32 25, %s60
    %p62 = scmp.lt.s32.totalorder %s61, 24
    %s63 = scalar_select %p62, %s61, 24
    %s64 = smul.addr %s63, 8
    %s65 = scalar_lea.vmem %s2, %s64
    %s66 = sadd.s32 0, 0
    %s67 = smul.u32 25, %s66
    %p68 = scmp.lt.s32.totalorder %s67, 24
    %s69 = scalar_select %p68, %s67, 24
    %s70 = smul.addr %s69, 8
    %s71 = scalar_lea.vmem %s0, %s70
    %s72 = sadd.s32 0, 0
    %s73 = smul.u32 25, %s72
    %s74 = sadd.s32 0, 0
    %s75 = smul.u32 25, %s74
    %p76 = scmp.lt.s32.totalorder %s75, 24
    %s77 = scalar_select %p76, %s75, 24
    %s78 = smul.addr %s77, 8
    %s79 = scalar_lea.vmem %s1, %s78
    %s80 = sadd.s32 0, 0
    %s81 = smul.u32 25, %s80
    %s82 = sadd.s32 0, 0
    %s83 = smul.u32 25, %s82
    %p84 = scmp.lt.s32.totalorder %s83, 24
    %s85 = scalar_select %p84, %s83, 24
    %s86 = smul.addr %s85, 8
    %s87 = scalar_lea.vmem %s2, %s86
    %s88 = sadd.s32 0, 0
    %s89 = smul.u32 25, %s88
    %p90 = scmp.eq.s32.totalorder 0, 0
    // Predicated region
    $region26: #{tpu_custom_call.1} parent=1 // pred_check
      %p91 = pneg %p90
    $region27: #{tpu_custom_call.1} parent=1 // pred_check_branch
      %93 = sbr.rel (%p91) target = $region29
    $region28: #{tpu_custom_call.1} parent=1 // pred_region
      %vm94 = vcmask 0
      %95 = vst.msk [vmem:[#allocation2] sm:$0x1] %vm94, 0.0
    $region29: #{tpu_custom_call.1} parent=1 // pred_fallthru
      _
    %v96 = vld [vmem:[%s71] sm:$0xff]
    %v97 = vld [vmem:[%s71 + $0x8] sm:$0xff]
    %v98 = vld [vmem:[%s71 + $0x10] sm:$0xff]
    %v99 = vld [vmem:[%s71 + $0x18] sm:$0xff]
    %v100 = vld [vmem:[%s71 + $0x20] sm:$0xff]
    %v101 = vld [vmem:[%s71 + $0x28] sm:$0xff]
    %v102 = vld [vmem:[%s71 + $0x30] sm:$0xff]
    %v103 = vld [vmem:[%s71 + $0x38] sm:$0xff]
    %v104 = vld [vmem:[%s71 + $0x40] sm:$0xff]
    %v105 = vld [vmem:[%s71 + $0x48] sm:$0xff]
    %v106 = vld [vmem:[%s71 + $0x50] sm:$0xff]
    %v107 = vld [vmem:[%s71 + $0x58] sm:$0xff]
    %v108 = vld [vmem:[%s71 + $0x60] sm:$0xff]
    %v109 = vld [vmem:[%s71 + $0x68] sm:$0xff]
    %v110 = vld [vmem:[%s71 + $0x70] sm:$0xff]
    %v111 = vld [vmem:[%s71 + $0x78] sm:$0xff]
    %v112 = vld [vmem:[%s71 + $0x80] sm:$0xff]
    %v113 = vld [vmem:[%s71 + $0x88] sm:$0xff]
    %v114 = vld [vmem:[%s71 + $0x90] sm:$0xff]
    %v115 = vld [vmem:[%s71 + $0x98] sm:$0xff]
    %v116 = vld [vmem:[%s71 + $0xa0] sm:$0xff]
    %v117 = vld [vmem:[%s71 + $0xa8] sm:$0xff]
    %v118 = vld [vmem:[%s71 + $0xb0] sm:$0xff]
    %v119 = vld [vmem:[%s71 + $0xb8] sm:$0xff]
    %v120 = vld [vmem:[%s71 + $0xc0] sm:$0xff]
    %v121 = vld [vmem:[%s79] sm:$0xff]
    %v122 = vld [vmem:[%s79 + $0x8] sm:$0xff]
    %v123 = vld [vmem:[%s79 + $0x10] sm:$0xff]
    %v124 = vld [vmem:[%s79 + $0x18] sm:$0xff]
    %v125 = vld [vmem:[%s79 + $0x20] sm:$0xff]
    %v126 = vld [vmem:[%s79 + $0x28] sm:$0xff]
    %v127 = vld [vmem:[%s79 + $0x30] sm:$0xff]
    %v128 = vld [vmem:[%s79 + $0x38] sm:$0xff]
    %v129 = vld [vmem:[%s79 + $0x40] sm:$0xff]
    %v130 = vld [vmem:[%s79 + $0x48] sm:$0xff]
    %v131 = vld [vmem:[%s79 + $0x50] sm:$0xff]
    %v132 = vld [vmem:[%s79 + $0x58] sm:$0xff]
    %v133 = vld [vmem:[%s79 + $0x60] sm:$0xff]
    %v134 = vld [vmem:[%s79 + $0x68] sm:$0xff]
    %v135 = vld [vmem:[%s79 + $0x70] sm:$0xff]
    %v136 = vld [vmem:[%s79 + $0x78] sm:$0xff]
    %v137 = vld [vmem:[%s79 + $0x80] sm:$0xff]
    %v138 = vld [vmem:[%s79 + $0x88] sm:$0xff]
    %v139 = vld [vmem:[%s79 + $0x90] sm:$0xff]
    %v140 = vld [vmem:[%s79 + $0x98] sm:$0xff]
    %v141 = vld [vmem:[%s79 + $0xa0] sm:$0xff]
    %v142 = vld [vmem:[%s79 + $0xa8] sm:$0xff]
    %v143 = vld [vmem:[%s79 + $0xb0] sm:$0xff]
    %v144 = vld [vmem:[%s79 + $0xb8] sm:$0xff]
    %v145 = vld [vmem:[%s79 + $0xc0] sm:$0xff]
    %v146 = vld [vmem:[%s4] sm:$0xff]
    %v147 = vld [vmem:[%s4 + $0x8] sm:$0xff]
    %v148 = vld [vmem:[%s3] sm:$0xff]
    %v149 = vld [vmem:[%s3 + $0x8] sm:$0xff]
    %v150 = vld [vmem:[%s3 + $0x10] sm:$0xff]
    %v151 = vld [vmem:[%s3 + $0x18] sm:$0xff]
    %vm152 = vcmask 261120
    %v154 = vsel %vm152, %v96, 0
    %v157 = vsel %vm152, %v97, 0
    %v160 = vsel %vm152, %v98, 0
    %v163 = vsel %vm152, %v99, 0
    %v166 = vsel %vm152, %v100, 0
    %v169 = vsel %vm152, %v101, 0
    %v172 = vsel %vm152, %v102, 0
    %v175 = vsel %vm152, %v103, 0
    %v178 = vsel %vm152, %v104, 0
    %v181 = vsel %vm152, %v105, 0
    %v184 = vsel %vm152, %v106, 0
    %v187 = vsel %vm152, %v107, 0
    %v190 = vsel %vm152, %v108, 0
    %v193 = vsel %vm152, %v109, 0
    %v196 = vsel %vm152, %v110, 0
    %v199 = vsel %vm152, %v111, 0
    %v202 = vsel %vm152, %v112, 0
    %v205 = vsel %vm152, %v113, 0
    %v208 = vsel %vm152, %v114, 0
    %v211 = vsel %vm152, %v115, 0
    %v214 = vsel %vm152, %v116, 0
    %v217 = vsel %vm152, %v117, 0
    %v220 = vsel %vm152, %v118, 0
    %v223 = vsel %vm152, %v119, 0
    %v226 = vsel %vm152, %v120, 0
    %228 = vmatprep.subr.mxu0 0.0
    %229 = vmatpush1.msra.mxu0 %v148
    %230 = vmatprep.subr.mxu0 0.0
    %231 = vmatpush1.msra.mxu0 %v149
    %232 = vmatprep.subr.mxu0 0.0
    %233 = vmatpush1.msra.mxu0 %v150
    %234 = vmatprep.subr.mxu0 0.0
    %235 = vmatpush1.msra.mxu0 %v151
    %236 = vmatprep.subr.mxu0 0.0
    %237 = vmatpush1.msra.mxu0 0.0
    %238 = vmatprep.subr.mxu0 0.0
    %239 = vmatpush1.msra.mxu0 0.0
    %240 = vmatprep.subr.mxu0 0.0
    %241 = vmatpush1.msra.mxu0 0.0
    %242 = vmatprep.subr.mxu0 0.0
    %243 = vmatpush1.msra.mxu0 0.0
    %244 = vmatprep.subr.mxu0 0.0
    %245 = vmatpush1.msra.mxu0 0.0
    %246 = vmatprep.subr.mxu0 0.0
    %247 = vmatpush1.msra.mxu0 0.0
    %248 = vmatprep.subr.mxu0 0.0
    %249 = vmatpush1.msra.mxu0 0.0
    %250 = vmatprep.subr.mxu0 0.0
    %251 = vmatpush1.msra.mxu0 0.0
    %252 = vmatprep.subr.mxu0 0.0
    %253 = vmatpush1.msra.mxu0 0.0
    %254 = vmatprep.subr.mxu0 0.0
    %255 = vmatpush1.msra.mxu0 0.0
    %256 = vmatprep.subr.mxu0 0.0
    %257 = vmatpush1.msra.mxu0 0.0
    %258 = vmatprep.subr.mxu0 0.0
    %259 = vmatpush1.msra.mxu0 0.0
    %260 = vmatprep.subr.mxu0 0.0
    %261 = vmatpush1.msra.mxu0 0.0
    %262 = vmatprep.subr.mxu0 0.0
    %263 = vmatpush1.msra.mxu0 0.0
    %264 = vmatprep.subr.mxu0 0.0
    %265 = vmatpush1.msra.mxu0 0.0
    %266 = vmatprep.subr.mxu0 0.0
    %267 = vmatpush1.msra.mxu0 0.0
    %268 = vmatprep.subr.mxu0 0.0
    %269 = vmatpush1.msra.mxu0 0.0
    %270 = vmatprep.subr.mxu0 0.0
    %271 = vmatpush1.msra.mxu0 0.0
    %272 = vmatprep.subr.mxu0 0.0
    %273 = vmatpush1.msra.mxu0 0.0
    %274 = vmatprep.subr.mxu0 0.0
    %275 = vmatpush1.msra.mxu0 0.0
    %276 = vmatprep.subr.mxu0 0.0
    %277 = vmatpush1.msra.mxu0 0.0
    %278 = vmatprep.subr.mxu0 0.0
    %279 = vmatpush1.msra.mxu0 0.0
    %280 = vmatprep.subr.mxu0 0.0
    %281 = vmatpush1.msra.mxu0 0.0
    %282 = vmatprep.subr.mxu0 0.0
    %283 = vmatpush1.msra.mxu0 0.0
    %284 = vmatprep.subr.mxu0 0.0
    %285 = vmatpush1.msra.mxu0 0.0
    %286 = vmatprep.subr.mxu0 0.0
    %287 = vmatpush1.msra.mxu0 0.0
    %288 = vmatprep.subr.mxu0 0.0
    %289 = vmatpush1.msra.mxu0 0.0
    %290 = vmatprep.subr.mxu0 0.0
    %291 = vmatpush1.msra.mxu0 0.0
    %292 = vmatprep.mubr.f32.mxu0 0.0
    %293 = vmatmul.mubr.f32.gmra.mrb[0].mxu0 %v154
    %v294 = vpop.f32.mrb[0].mxu0
    %v295 = vadd.f32 0.0, %v294
    %v296 = vpop.f32.mrb[0].mxu0
    %297 = vmatprep.mubr.f32.mxu0 0.0
    %298 = vmatmul.mubr.f32.gmra.mrb[0].mxu0 %v157
    %v299 = vpop.f32.mrb[0].mxu0
    %v300 = vadd.f32 0.0, %v299
    %v301 = vpop.f32.mrb[0].mxu0
    %302 = vmatprep.mubr.f32.mxu0 0.0
    %303 = vmatmul.mubr.f32.gmra.mrb[0].mxu0 %v160
    %v304 = vpop.f32.mrb[0].mxu0
    %v305 = vadd.f32 0.0, %v304
    %v306 = vpop.f32.mrb[0].mxu0
    %307 = vmatprep.mubr.f32.mxu0 0.0
    %308 = vmatmul.mubr.f32.gmra.mrb[0].mxu0 %v163
    %v309 = vpop.f32.mrb[0].mxu0
    %v310 = vadd.f32 0.0, %v309
    %v311 = vpop.f32.mrb[0].mxu0
    %312 = vmatprep.mubr.f32.mxu0 0.0
    %313 = vmatmul.mubr.f32.gmra.mrb[0].mxu0 %v166
    %v314 = vpop.f32.mrb[0].mxu0
    %v315 = vadd.f32 0.0, %v314
    %v316 = vpop.f32.mrb[0].mxu0
    %317 = vmatprep.mubr.f32.mxu0 0.0
    %318 = vmatmul.mubr.f32.gmra.mrb[0].mxu0 %v169
    %v319 = vpop.f32.mrb[0].mxu0
    %v320 = vadd.f32 0.0, %v319
    %v321 = vpop.f32.mrb[0].mxu0
    %322 = vmatprep.mubr.f32.mxu0 0.0
    %323 = vmatmul.mubr.f32.gmra.mrb[0].mxu0 %v172
    %v324 = vpop.f32.mrb[0].mxu0
    %v325 = vadd.f32 0.0, %v324
    %v326 = vpop.f32.mrb[0].mxu0
    %327 = vmatprep.mubr.f32.mxu0 0.0
    %328 = vmatmul.mubr.f32.gmra.mrb[0].mxu0 %v175
    %v329 = vpop.f32.mrb[0].mxu0
    %v330 = vadd.f32 0.0, %v329
    %v331 = vpop.f32.mrb[0].mxu0
    %332 = vmatprep.mubr.f32.mxu0 0.0
    %333 = vmatmul.mubr.f32.gmra.mrb[0].mxu0 %v178
    %v334 = vpop.f32.mrb[0].mxu0
    %v335 = vadd.f32 0.0, %v334
    %v336 = vpop.f32.mrb[0].mxu0
    %337 = vmatprep.mubr.f32.mxu0 0.0
    %338 = vmatmul.mubr.f32.gmra.mrb[0].mxu0 %v181
    %v339 = vpop.f32.mrb[0].mxu0
    %v340 = vadd.f32 0.0, %v339
    %v341 = vpop.f32.mrb[0].mxu0
    %342 = vmatprep.mubr.f32.mxu0 0.0
    %343 = vmatmul.mubr.f32.gmra.mrb[0].mxu0 %v184
    %v344 = vpop.f32.mrb[0].mxu0
    %v345 = vadd.f32 0.0, %v344
    %v346 = vpop.f32.mrb[0].mxu0
    %347 = vmatprep.mubr.f32.mxu0 0.0
    %348 = vmatmul.mubr.f32.gmra.mrb[0].mxu0 %v187
    %v349 = vpop.f32.mrb[0].mxu0
    %v350 = vadd.f32 0.0, %v349
    %v351 = vpop.f32.mrb[0].mxu0
    %352 = vmatprep.mubr.f32.mxu0 0.0
    %353 = vmatmul.mubr.f32.gmra.mrb[0].mxu0 %v190
    %v354 = vpop.f32.mrb[0].mxu0
    %v355 = vadd.f32 0.0, %v354
    %v356 = vpop.f32.mrb[0].mxu0
    %357 = vmatprep.mubr.f32.mxu0 0.0
    %358 = vmatmul.mubr.f32.gmra.mrb[0].mxu0 %v193
    %v359 = vpop.f32.mrb[0].mxu0
    %v360 = vadd.f32 0.0, %v359
    %v361 = vpop.f32.mrb[0].mxu0
    %362 = vmatprep.mubr.f32.mxu0 0.0
    %363 = vmatmul.mubr.f32.gmra.mrb[0].mxu0 %v196
    %v364 = vpop.f32.mrb[0].mxu0
    %v365 = vadd.f32 0.0, %v364
    %v366 = vpop.f32.mrb[0].mxu0
    %367 = vmatprep.mubr.f32.mxu0 0.0
    %368 = vmatmul.mubr.f32.gmra.mrb[0].mxu0 %v199
    %v369 = vpop.f32.mrb[0].mxu0
    %v370 = vadd.f32 0.0, %v369
    %v371 = vpop.f32.mrb[0].mxu0
    %372 = vmatprep.mubr.f32.mxu0 0.0
    %373 = vmatmul.mubr.f32.gmra.mrb[0].mxu0 %v202
    %v374 = vpop.f32.mrb[0].mxu0
    %v375 = vadd.f32 0.0, %v374
    %v376 = vpop.f32.mrb[0].mxu0
    %377 = vmatprep.mubr.f32.mxu0 0.0
    %378 = vmatmul.mubr.f32.gmra.mrb[0].mxu0 %v205
    %v379 = vpop.f32.mrb[0].mxu0
    %v380 = vadd.f32 0.0, %v379
    %v381 = vpop.f32.mrb[0].mxu0
    %382 = vmatprep.mubr.f32.mxu0 0.0
    %383 = vmatmul.mubr.f32.gmra.mrb[0].mxu0 %v208
    %v384 = vpop.f32.mrb[0].mxu0
    %v385 = vadd.f32 0.0, %v384
    %v386 = vpop.f32.mrb[0].mxu0
    %387 = vmatprep.mubr.f32.mxu0 0.0
    %388 = vmatmul.mubr.f32.gmra.mrb[0].mxu0 %v211
    %v389 = vpop.f32.mrb[0].mxu0
    %v390 = vadd.f32 0.0, %v389
    %v391 = vpop.f32.mrb[0].mxu0
    %392 = vmatprep.mubr.f32.mxu0 0.0
    %393 = vmatmul.mubr.f32.gmra.mrb[0].mxu0 %v214
    %v394 = vpop.f32.mrb[0].mxu0
    %v395 = vadd.f32 0.0, %v394
    %v396 = vpop.f32.mrb[0].mxu0
    %397 = vmatprep.mubr.f32.mxu0 0.0
    %398 = vmatmul.mubr.f32.gmra.mrb[0].mxu0 %v217
    %v399 = vpop.f32.mrb[0].mxu0
    %v400 = vadd.f32 0.0, %v399
    %v401 = vpop.f32.mrb[0].mxu0
    %402 = vmatprep.mubr.f32.mxu0 0.0
    %403 = vmatmul.mubr.f32.gmra.mrb[0].mxu0 %v220
    %v404 = vpop.f32.mrb[0].mxu0
    %v405 = vadd.f32 0.0, %v404
    %v406 = vpop.f32.mrb[0].mxu0
    %407 = vmatprep.mubr.f32.mxu0 0.0
    %408 = vmatmul.mubr.f32.gmra.mrb[0].mxu0 %v223
    %v409 = vpop.f32.mrb[0].mxu0
    %v410 = vadd.f32 0.0, %v409
    %v411 = vpop.f32.mrb[0].mxu0
    %412 = vmatprep.mubr.f32.mxu0 0.0
    %413 = vmatmul.mubr.f32.gmra.mrb[0].mxu0 %v226
    %v414 = vpop.f32.mrb[0].mxu0
    %v415 = vadd.f32 0.0, %v414
    %v416 = vpop.f32.mrb[0].mxu0
    %417 = vdwg.mxu0
    %vm418 = vcmask 130048
    %v420 = vsel %vm418, %v121, 0
    %v423 = vsel %vm418, %v122, 0
    %v426 = vsel %vm418, %v123, 0
    %v429 = vsel %vm418, %v124, 0
    %v432 = vsel %vm418, %v125, 0
    %v435 = vsel %vm418, %v126, 0
    %v438 = vsel %vm418, %v127, 0
    %v441 = vsel %vm418, %v128, 0
    %v444 = vsel %vm418, %v129, 0
    %v447 = vsel %vm418, %v130, 0
    %v450 = vsel %vm418, %v131, 0
    %v453 = vsel %vm418, %v132, 0
    %v456 = vsel %vm418, %v133, 0
    %v459 = vsel %vm418, %v134, 0
    %v462 = vsel %vm418, %v135, 0
    %v465 = vsel %vm418, %v136, 0
    %v468 = vsel %vm418, %v137, 0
    %v471 = vsel %vm418, %v138, 0
    %v474 = vsel %vm418, %v139, 0
    %v477 = vsel %vm418, %v140, 0
    %v480 = vsel %vm418, %v141, 0
    %v483 = vsel %vm418, %v142, 0
    %v486 = vsel %vm418, %v143, 0
    %v489 = vsel %vm418, %v144, 0
    %v492 = vsel %vm418, %v145, 0
    %494 = vmatprep.subr.mxu0 0.0
    %495 = vmatpush1.msra.mxu0 %v146
    %496 = vmatprep.subr.mxu0 0.0
    %497 = vmatpush1.msra.mxu0 %v147
    %498 = vmatprep.subr.mxu0 0.0
    %499 = vmatpush1.msra.mxu0 0.0
    %500 = vmatprep.subr.mxu0 0.0
    %501 = vmatpush1.msra.mxu0 0.0
    %502 = vmatprep.subr.mxu0 0.0
    %503 = vmatpush1.msra.mxu0 0.0
    %504 = vmatprep.subr.mxu0 0.0
    %505 = vmatpush1.msra.mxu0 0.0
    %506 = vmatprep.subr.mxu0 0.0
    %507 = vmatpush1.msra.mxu0 0.0
    %508 = vmatprep.subr.mxu0 0.0
    %509 = vmatpush1.msra.mxu0 0.0
    %510 = vmatprep.subr.mxu0 0.0
    %511 = vmatpush1.msra.mxu0 0.0
    %512 = vmatprep.subr.mxu0 0.0
    %513 = vmatpush1.msra.mxu0 0.0
    %514 = vmatprep.subr.mxu0 0.0
    %515 = vmatpush1.msra.mxu0 0.0
    %516 = vmatprep.subr.mxu0 0.0
    %517 = vmatpush1.msra.mxu0 0.0
    %518 = vmatprep.subr.mxu0 0.0
    %519 = vmatpush1.msra.mxu0 0.0
    %520 = vmatprep.subr.mxu0 0.0
    %521 = vmatpush1.msra.mxu0 0.0
    %522 = vmatprep.subr.mxu0 0.0
    %523 = vmatpush1.msra.mxu0 0.0
    %524 = vmatprep.subr.mxu0 0.0
    %525 = vmatpush1.msra.mxu0 0.0
    %526 = vmatprep.subr.mxu0 0.0
    %527 = vmatpush1.msra.mxu0 0.0
    %528 = vmatprep.subr.mxu0 0.0
    %529 = vmatpush1.msra.mxu0 0.0
    %530 = vmatprep.subr.mxu0 0.0
    %531 = vmatpush1.msra.mxu0 0.0
    %532 = vmatprep.subr.mxu0 0.0
    %533 = vmatpush1.msra.mxu0 0.0
    %534 = vmatprep.subr.mxu0 0.0
    %535 = vmatpush1.msra.mxu0 0.0
    %536 = vmatprep.subr.mxu0 0.0
    %537 = vmatpush1.msra.mxu0 0.0
    %538 = vmatprep.subr.mxu0 0.0
    %539 = vmatpush1.msra.mxu0 0.0
    %540 = vmatprep.subr.mxu0 0.0
    %541 = vmatpush1.msra.mxu0 0.0
    %542 = vmatprep.subr.mxu0 0.0
    %543 = vmatpush1.msra.mxu0 0.0
    %544 = vmatprep.subr.mxu0 0.0
    %545 = vmatpush1.msra.mxu0 0.0
    %546 = vmatprep.subr.mxu0 0.0
    %547 = vmatpush1.msra.mxu0 0.0
    %548 = vmatprep.subr.mxu0 0.0
    %549 = vmatpush1.msra.mxu0 0.0
    %550 = vmatprep.subr.mxu0 0.0
    %551 = vmatpush1.msra.mxu0 0.0
    %552 = vmatprep.subr.mxu0 0.0
    %553 = vmatpush1.msra.mxu0 0.0
    %554 = vmatprep.subr.mxu0 0.0
    %555 = vmatpush1.msra.mxu0 0.0
    %556 = vmatprep.subr.mxu0 0.0
    %557 = vmatpush1.msra.mxu0 0.0
    %558 = vmatprep.mubr.f32.mxu0 0.0
    %559 = vmatmul.mubr.f32.gmra.mrb[0].mxu0 %v420
    %v560 = vpop.f32.mrb[0].mxu0
    %v561 = vadd.f32 %v295, %v560
    %v562 = vpop.f32.mrb[0].mxu0
    %563 = vmatprep.mubr.f32.mxu0 0.0
    %564 = vmatmul.mubr.f32.gmra.mrb[0].mxu0 %v423
    %v565 = vpop.f32.mrb[0].mxu0
    %v566 = vadd.f32 %v300, %v565
    %v567 = vpop.f32.mrb[0].mxu0
    %568 = vmatprep.mubr.f32.mxu0 0.0
    %569 = vmatmul.mubr.f32.gmra.mrb[0].mxu0 %v426
    %v570 = vpop.f32.mrb[0].mxu0
    %v571 = vadd.f32 %v305, %v570
    %v572 = vpop.f32.mrb[0].mxu0
    %573 = vmatprep.mubr.f32.mxu0 0.0
    %574 = vmatmul.mubr.f32.gmra.mrb[0].mxu0 %v429
    %v575 = vpop.f32.mrb[0].mxu0
    %v576 = vadd.f32 %v310, %v575
    %v577 = vpop.f32.mrb[0].mxu0
    %578 = vmatprep.mubr.f32.mxu0 0.0
    %579 = vmatmul.mubr.f32.gmra.mrb[0].mxu0 %v432
    %v580 = vpop.f32.mrb[0].mxu0
    %v581 = vadd.f32 %v315, %v580
    %v582 = vpop.f32.mrb[0].mxu0
    %583 = vmatprep.mubr.f32.mxu0 0.0
    %584 = vmatmul.mubr.f32.gmra.mrb[0].mxu0 %v435
    %v585 = vpop.f32.mrb[0].mxu0
    %v586 = vadd.f32 %v320, %v585
    %v587 = vpop.f32.mrb[0].mxu0
    %588 = vmatprep.mubr.f32.mxu0 0.0
    %589 = vmatmul.mubr.f32.gmra.mrb[0].mxu0 %v438
    %v590 = vpop.f32.mrb[0].mxu0
    %v591 = vadd.f32 %v325, %v590
    %v592 = vpop.f32.mrb[0].mxu0
    %593 = vmatprep.mubr.f32.mxu0 0.0
    %594 = vmatmul.mubr.f32.gmra.mrb[0].mxu0 %v441
    %v595 = vpop.f32.mrb[0].mxu0
    %v596 = vadd.f32 %v330, %v595
    %v597 = vpop.f32.mrb[0].mxu0
    %598 = vmatprep.mubr.f32.mxu0 0.0
    %599 = vmatmul.mubr.f32.gmra.mrb[0].mxu0 %v444
    %v600 = vpop.f32.mrb[0].mxu0
    %v601 = vadd.f32 %v335, %v600
    %v602 = vpop.f32.mrb[0].mxu0
    %603 = vmatprep.mubr.f32.mxu0 0.0
    %604 = vmatmul.mubr.f32.gmra.mrb[0].mxu0 %v447
    %v605 = vpop.f32.mrb[0].mxu0
    %v606 = vadd.f32 %v340, %v605
    %v607 = vpop.f32.mrb[0].mxu0
    %608 = vmatprep.mubr.f32.mxu0 0.0
    %609 = vmatmul.mubr.f32.gmra.mrb[0].mxu0 %v450
    %v610 = vpop.f32.mrb[0].mxu0
    %v611 = vadd.f32 %v345, %v610
    %v612 = vpop.f32.mrb[0].mxu0
    %613 = vmatprep.mubr.f32.mxu0 0.0
    %614 = vmatmul.mubr.f32.gmra.mrb[0].mxu0 %v453
    %v615 = vpop.f32.mrb[0].mxu0
    %v616 = vadd.f32 %v350, %v615
    %v617 = vpop.f32.mrb[0].mxu0
    %618 = vmatprep.mubr.f32.mxu0 0.0
    %619 = vmatmul.mubr.f32.gmra.mrb[0].mxu0 %v456
    %v620 = vpop.f32.mrb[0].mxu0
    %v621 = vadd.f32 %v355, %v620
    %v622 = vpop.f32.mrb[0].mxu0
    %623 = vmatprep.mubr.f32.mxu0 0.0
    %624 = vmatmul.mubr.f32.gmra.mrb[0].mxu0 %v459
    %v625 = vpop.f32.mrb[0].mxu0
    %v626 = vadd.f32 %v360, %v625
    %v627 = vpop.f32.mrb[0].mxu0
    %628 = vmatprep.mubr.f32.mxu0 0.0
    %629 = vmatmul.mubr.f32.gmra.mrb[0].mxu0 %v462
    %v630 = vpop.f32.mrb[0].mxu0
    %v631 = vadd.f32 %v365, %v630
    %v632 = vpop.f32.mrb[0].mxu0
    %633 = vmatprep.mubr.f32.mxu0 0.0
    %634 = vmatmul.mubr.f32.gmra.mrb[0].mxu0 %v465
    %v635 = vpop.f32.mrb[0].mxu0
    %v636 = vadd.f32 %v370, %v635
    %v637 = vpop.f32.mrb[0].mxu0
    %638 = vmatprep.mubr.f32.mxu0 0.0
    %639 = vmatmul.mubr.f32.gmra.mrb[0].mxu0 %v468
    %v640 = vpop.f32.mrb[0].mxu0
    %v641 = vadd.f32 %v375, %v640
    %v642 = vpop.f32.mrb[0].mxu0
    %643 = vmatprep.mubr.f32.mxu0 0.0
    %644 = vmatmul.mubr.f32.gmra.mrb[0].mxu0 %v471
    %v645 = vpop.f32.mrb[0].mxu0
    %v646 = vadd.f32 %v380, %v645
    %v647 = vpop.f32.mrb[0].mxu0
    %648 = vmatprep.mubr.f32.mxu0 0.0
    %649 = vmatmul.mubr.f32.gmra.mrb[0].mxu0 %v474
    %v650 = vpop.f32.mrb[0].mxu0
    %v651 = vadd.f32 %v385, %v650
    %v652 = vpop.f32.mrb[0].mxu0
    %653 = vmatprep.mubr.f32.mxu0 0.0
    %654 = vmatmul.mubr.f32.gmra.mrb[0].mxu0 %v477
    %v655 = vpop.f32.mrb[0].mxu0
    %v656 = vadd.f32 %v390, %v655
    %v657 = vpop.f32.mrb[0].mxu0
    %658 = vmatprep.mubr.f32.mxu0 0.0
    %659 = vmatmul.mubr.f32.gmra.mrb[0].mxu0 %v480
    %v660 = vpop.f32.mrb[0].mxu0
    %v661 = vadd.f32 %v395, %v660
    %v662 = vpop.f32.mrb[0].mxu0
    %663 = vmatprep.mubr.f32.mxu0 0.0
    %664 = vmatmul.mubr.f32.gmra.mrb[0].mxu0 %v483
    %v665 = vpop.f32.mrb[0].mxu0
    %v666 = vadd.f32 %v400, %v665
    %v667 = vpop.f32.mrb[0].mxu0
    %668 = vmatprep.mubr.f32.mxu0 0.0
    %669 = vmatmul.mubr.f32.gmra.mrb[0].mxu0 %v486
    %v670 = vpop.f32.mrb[0].mxu0
    %v671 = vadd.f32 %v405, %v670
    %v672 = vpop.f32.mrb[0].mxu0
    %673 = vmatprep.mubr.f32.mxu0 0.0
    %674 = vmatmul.mubr.f32.gmra.mrb[0].mxu0 %v489
    %v675 = vpop.f32.mrb[0].mxu0
    %v676 = vadd.f32 %v410, %v675
    %v677 = vpop.f32.mrb[0].mxu0
    %678 = vmatprep.mubr.f32.mxu0 0.0
    %679 = vmatmul.mubr.f32.gmra.mrb[0].mxu0 %v492
    %v680 = vpop.f32.mrb[0].mxu0
    %v681 = vadd.f32 %v415, %v680
    %v682 = vpop.f32.mrb[0].mxu0
    %683 = vdwg.mxu0
    %v684 = vld [vmem:[%s5] sm:$0x1]
    %v686 = vlaneseq
    %v687 = vshrl.u32 %v686, 7
    %v688 = vsub.s32 0, %v687
    %v689 = vrot.slane %v684, %v688
    %v691 = vsub.f32 %v561, %v689
    %v692 = vsub.f32 %v566, %v689
    %v693 = vsub.f32 %v571, %v689
    %v694 = vsub.f32 %v576, %v689
    %v695 = vsub.f32 %v581, %v689
    %v696 = vsub.f32 %v586, %v689
    %v697 = vsub.f32 %v591, %v689
    %v698 = vsub.f32 %v596, %v689
    %v699 = vsub.f32 %v601, %v689
    %v700 = vsub.f32 %v606, %v689
    %v701 = vsub.f32 %v611, %v689
    %v702 = vsub.f32 %v616, %v689
    %v703 = vsub.f32 %v621, %v689
    %v704 = vsub.f32 %v626, %v689
    %v705 = vsub.f32 %v631, %v689
    %v706 = vsub.f32 %v636, %v689
    %v707 = vsub.f32 %v641, %v689
    %v708 = vsub.f32 %v646, %v689
    %v709 = vsub.f32 %v651, %v689
    %v710 = vsub.f32 %v656, %v689
    %v711 = vsub.f32 %v661, %v689
    %v712 = vsub.f32 %v666, %v689
    %v713 = vsub.f32 %v671, %v689
    %v714 = vsub.f32 %v676, %v689
    %v715 = vsub.f32 %v681, %v689
    %v716 = vmul.f32 %v691, %v691
    %v717 = vmul.f32 %v692, %v692
    %v718 = vmul.f32 %v693, %v693
    %v719 = vmul.f32 %v694, %v694
    %v720 = vmul.f32 %v695, %v695
    %v721 = vmul.f32 %v696, %v696
    %v722 = vmul.f32 %v697, %v697
    %v723 = vmul.f32 %v698, %v698
    %v724 = vmul.f32 %v699, %v699
    %v725 = vmul.f32 %v700, %v700
    %v726 = vmul.f32 %v701, %v701
    %v727 = vmul.f32 %v702, %v702
    %v728 = vmul.f32 %v703, %v703
    %v729 = vmul.f32 %v704, %v704
    %v730 = vmul.f32 %v705, %v705
    %v731 = vmul.f32 %v706, %v706
    %v732 = vmul.f32 %v707, %v707
    %v733 = vmul.f32 %v708, %v708
    %v734 = vmul.f32 %v709, %v709
    %v735 = vmul.f32 %v710, %v710
    %v736 = vmul.f32 %v711, %v711
    %v737 = vmul.f32 %v712, %v712
    %v738 = vmul.f32 %v713, %v713
    %v739 = vmul.f32 %v714, %v714
    %v740 = vmul.f32 %v715, %v715
    %v741 = vld [vmem:[%s87] sm:$0xff]
    %v742 = vld [vmem:[%s87 + $0x8] sm:$0xff]
    %v743 = vld [vmem:[%s87 + $0x10] sm:$0xff]
    %v744 = vld [vmem:[%s87 + $0x18] sm:$0xff]
    %v745 = vld [vmem:[%s87 + $0x20] sm:$0xff]
    %v746 = vld [vmem:[%s87 + $0x28] sm:$0xff]
    %v747 = vld [vmem:[%s87 + $0x30] sm:$0xff]
    %v748 = vld [vmem:[%s87 + $0x38] sm:$0xff]
    %v749 = vld [vmem:[%s87 + $0x40] sm:$0xff]
    %v750 = vld [vmem:[%s87 + $0x48] sm:$0xff]
    %v751 = vld [vmem:[%s87 + $0x50] sm:$0xff]
    %v752 = vld [vmem:[%s87 + $0x58] sm:$0xff]
    %v753 = vld [vmem:[%s87 + $0x60] sm:$0xff]
    %v754 = vld [vmem:[%s87 + $0x68] sm:$0xff]
    %v755 = vld [vmem:[%s87 + $0x70] sm:$0xff]
    %v756 = vld [vmem:[%s87 + $0x78] sm:$0xff]
    %v757 = vld [vmem:[%s87 + $0x80] sm:$0xff]
    %v758 = vld [vmem:[%s87 + $0x88] sm:$0xff]
    %v759 = vld [vmem:[%s87 + $0x90] sm:$0xff]
    %v760 = vld [vmem:[%s87 + $0x98] sm:$0xff]
    %v761 = vld [vmem:[%s87 + $0xa0] sm:$0xff]
    %v762 = vld [vmem:[%s87 + $0xa8] sm:$0xff]
    %v763 = vld [vmem:[%s87 + $0xb0] sm:$0xff]
    %v764 = vld [vmem:[%s87 + $0xb8] sm:$0xff]
    %v765 = vld [vmem:[%s87 + $0xc0] sm:$0xff]
    %v766 = vsub.f32 %v121, %v741
    %v767 = vsub.f32 %v122, %v742
    %v768 = vsub.f32 %v123, %v743
    %v769 = vsub.f32 %v124, %v744
    %v770 = vsub.f32 %v125, %v745
    %v771 = vsub.f32 %v126, %v746
    %v772 = vsub.f32 %v127, %v747
    %v773 = vsub.f32 %v128, %v748
    %v774 = vsub.f32 %v129, %v749
    %v775 = vsub.f32 %v130, %v750
    %v776 = vsub.f32 %v131, %v751
    %v777 = vsub.f32 %v132, %v752
    %v778 = vsub.f32 %v133, %v753
    %v779 = vsub.f32 %v134, %v754
    %v780 = vsub.f32 %v135, %v755
    %v781 = vsub.f32 %v136, %v756
    %v782 = vsub.f32 %v137, %v757
    %v783 = vsub.f32 %v138, %v758
    %v784 = vsub.f32 %v139, %v759
    %v785 = vsub.f32 %v140, %v760
    %v786 = vsub.f32 %v141, %v761
    %v787 = vsub.f32 %v142, %v762
    %v788 = vsub.f32 %v143, %v763
    %v789 = vsub.f32 %v144, %v764
    %v790 = vsub.f32 %v145, %v765
    %v791 = vmul.f32 %v766, %v766
    %v792 = vmul.f32 %v767, %v767
    %v793 = vmul.f32 %v768, %v768
    %v794 = vmul.f32 %v769, %v769
    %v795 = vmul.f32 %v770, %v770
    %v796 = vmul.f32 %v771, %v771
    %v797 = vmul.f32 %v772, %v772
    %v798 = vmul.f32 %v773, %v773
    %v799 = vmul.f32 %v774, %v774
    %v800 = vmul.f32 %v775, %v775
    %v801 = vmul.f32 %v776, %v776
    %v802 = vmul.f32 %v777, %v777
    %v803 = vmul.f32 %v778, %v778
    %v804 = vmul.f32 %v779, %v779
    %v805 = vmul.f32 %v780, %v780
    %v806 = vmul.f32 %v781, %v781
    %v807 = vmul.f32 %v782, %v782
    %v808 = vmul.f32 %v783, %v783
    %v809 = vmul.f32 %v784, %v784
    %v810 = vmul.f32 %v785, %v785
    %v811 = vmul.f32 %v786, %v786
    %v812 = vmul.f32 %v787, %v787
    %v813 = vmul.f32 %v788, %v788
    %v814 = vmul.f32 %v789, %v789
    %v815 = vmul.f32 %v790, %v790
    %v816 = vld [vmem:[#allocation2] sm:$0x1]
    %v817 = vsel %vm418, %v791, 0.0
    %v818 = vsel %vm418, %v792, 0.0
    %v819 = vadd.f32 %v817, %v818
    %v820 = vsel %vm418, %v793, 0.0
    %v821 = vadd.f32 %v819, %v820
    %v822 = vsel %vm418, %v794, 0.0
    %v823 = vadd.f32 %v821, %v822
    %v824 = vsel %vm418, %v795, 0.0
    %v825 = vadd.f32 %v823, %v824
    %v826 = vsel %vm418, %v796, 0.0
    %v827 = vadd.f32 %v825, %v826
    %v828 = vsel %vm418, %v797, 0.0
    %v829 = vadd.f32 %v827, %v828
    %v830 = vsel %vm418, %v798, 0.0
    %v831 = vadd.f32 %v829, %v830
    %v832 = vsel %vm418, %v799, 0.0
    %v833 = vadd.f32 %v831, %v832
    %v834 = vsel %vm418, %v800, 0.0
    %v835 = vadd.f32 %v833, %v834
    %v836 = vsel %vm418, %v801, 0.0
    %v837 = vadd.f32 %v835, %v836
    %v838 = vsel %vm418, %v802, 0.0
    %v839 = vadd.f32 %v837, %v838
    %v840 = vsel %vm418, %v803, 0.0
    %v841 = vadd.f32 %v839, %v840
    %v842 = vsel %vm418, %v804, 0.0
    %v843 = vadd.f32 %v841, %v842
    %v844 = vsel %vm418, %v805, 0.0
    %v845 = vadd.f32 %v843, %v844
    %v846 = vsel %vm418, %v806, 0.0
    %v847 = vadd.f32 %v845, %v846
    %v848 = vsel %vm418, %v807, 0.0
    %v849 = vadd.f32 %v847, %v848
    %v850 = vsel %vm418, %v808, 0.0
    %v851 = vadd.f32 %v849, %v850
    %v852 = vsel %vm418, %v809, 0.0
    %v853 = vadd.f32 %v851, %v852
    %v854 = vsel %vm418, %v810, 0.0
    %v855 = vadd.f32 %v853, %v854
    %v856 = vsel %vm418, %v811, 0.0
    %v857 = vadd.f32 %v855, %v856
    %v858 = vsel %vm418, %v812, 0.0
    %v859 = vadd.f32 %v857, %v858
    %v860 = vsel %vm418, %v813, 0.0
    %v861 = vadd.f32 %v859, %v860
    %v862 = vsel %vm418, %v814, 0.0
    %v863 = vadd.f32 %v861, %v862
    %v864 = vsel %vm418, %v815, 0.0
    %v865 = vadd.f32 %v863, %v864
    %866 = vadd.xlane.f32.xlu0 %v865
    %v867 = vpop.xlane.xlu0 %866
    %v868 = vrot.slane %v867, 4
    %v869 = vadd.f32 %v867, %v868
    %v870 = vrot.slane %v869, 2
    %v871 = vadd.f32 %v869, %v870
    %v872 = vrot.slane %v871, 1
    %v873 = vadd.f32 %v871, %v872
    %s874 = vtos %v873
    %s875 = smul.f32 %s874, 0.0003125
    %vm876 = vcmask 64512
    %v877 = vsel %vm876, %v716, 0.0
    %v878 = vsel %vm876, %v717, 0.0
    %v879 = vadd.f32 %v877, %v878
    %v880 = vsel %vm876, %v718, 0.0
    %v881 = vadd.f32 %v879, %v880
    %v882 = vsel %vm876, %v719, 0.0
    %v883 = vadd.f32 %v881, %v882
    %v884 = vsel %vm876, %v720, 0.0
    %v885 = vadd.f32 %v883, %v884
    %v886 = vsel %vm876, %v721, 0.0
    %v887 = vadd.f32 %v885, %v886
    %v888 = vsel %vm876, %v722, 0.0
    %v889 = vadd.f32 %v887, %v888
    %v890 = vsel %vm876, %v723, 0.0
    %v891 = vadd.f32 %v889, %v890
    %v892 = vsel %vm876, %v724, 0.0
    %v893 = vadd.f32 %v891, %v892
    %v894 = vsel %vm876, %v725, 0.0
    %v895 = vadd.f32 %v893, %v894
    %v896 = vsel %vm876, %v726, 0.0
    %v897 = vadd.f32 %v895, %v896
    %v898 = vsel %vm876, %v727, 0.0
    %v899 = vadd.f32 %v897, %v898
    %v900 = vsel %vm876, %v728, 0.0
    %v901 = vadd.f32 %v899, %v900
    %v902 = vsel %vm876, %v729, 0.0
    %v903 = vadd.f32 %v901, %v902
    %v904 = vsel %vm876, %v730, 0.0
    %v905 = vadd.f32 %v903, %v904
    %v906 = vsel %vm876, %v731, 0.0
    %v907 = vadd.f32 %v905, %v906
    %v908 = vsel %vm876, %v732, 0.0
    %v909 = vadd.f32 %v907, %v908
    %v910 = vsel %vm876, %v733, 0.0
    %v911 = vadd.f32 %v909, %v910
    %v912 = vsel %vm876, %v734, 0.0
    %v913 = vadd.f32 %v911, %v912
    %v914 = vsel %vm876, %v735, 0.0
    %v915 = vadd.f32 %v913, %v914
    %v916 = vsel %vm876, %v736, 0.0
    %v917 = vadd.f32 %v915, %v916
    %v918 = vsel %vm876, %v737, 0.0
    %v919 = vadd.f32 %v917, %v918
    %v920 = vsel %vm876, %v738, 0.0
    %v921 = vadd.f32 %v919, %v920
    %v922 = vsel %vm876, %v739, 0.0
    %v923 = vadd.f32 %v921, %v922
    %v924 = vsel %vm876, %v740, 0.0
    %v925 = vadd.f32 %v923, %v924
    %926 = vadd.xlane.f32.xlu0 %v925
    %v927 = vpop.xlane.xlu0 %926
    %v928 = vrot.slane %v927, 4
    %v929 = vadd.f32 %v927, %v928
    %v930 = vrot.slane %v929, 2
    %v931 = vadd.f32 %v929, %v930
    %v932 = vrot.slane %v931, 1
    %v933 = vadd.f32 %v931, %v932
    %s934 = vtos %v933
    %s935 = smul.f32 %s934, 0.0003125
    %s936 = sadd.f32 %s875, %s935
    %v937 = vstv %s936
    %v938 = vadd.f32 %v816, %v937
    %vm939 = vcmask 0
    %940 = vst.msk [vmem:[#allocation2] sm:$0x1] %vm939, %v938
    // Predicated region
    $region30: #{tpu_custom_call.1} parent=1 // pred_check
      _
    $region31: #{tpu_custom_call.1} parent=1 // pred_check_branch
      %942 = sbr.rel (0) target = $region33
    $region32: #{tpu_custom_call.1} parent=1 // pred_region
      %s944 = ssub.s32 16, 16
      %945 = vsyncadd [#allocation3], %s944
      %s947 = sshll.u32 [#allocation2], 4
      %s948 = int_to_ptr.vmem [resolvable:$true] %s947
      %950 = dma.vmem_to_hbm [thread:$0]  %s948, 16, %s6, [#allocation3]
    $region33: #{tpu_custom_call.1} parent=1 // pred_fallthru
      _
    // Predicated region
    $region34: #{tpu_custom_call.1} parent=1 // pred_check
      _
    $region35: #{tpu_custom_call.1} parent=1 // pred_check_branch
      %952 = sbr.rel (0) target = $region37
    $region36: #{tpu_custom_call.1} parent=1 // pred_region
      %953 = dma.done [#allocation3], 16
    $region37: #{tpu_custom_call.1} parent=1 // pred_fallthru
      _
    %954 = vsyncpa [#allocation3], 1

</llo_original>
